<compile_context>
chip_gen: v7x
topology: tpu7x:2x2x1
jax: 0.10.0
libtpu: 0.0.40
codegen_flags: <defaults>
</compile_context>

<pallas_src>
import functools

import jax
import jax.numpy as jnp
from jax import lax
from jax.experimental import pallas as pl
from jax.experimental.pallas import tpu as pltpu

BN_EPS = 1e-5


# ----------------------------------------------------------------------------
# Kernel 1: h = x @ w1_t + b1, plus per-feature sum / sum-of-squares (f32).
# Grid: (num_batch_tiles,), "arbitrary" (stats are a batch reduction).
# ----------------------------------------------------------------------------
def _linear1_stats_kernel(x_ref, w1t_ref, b1_ref, h_ref, ssum_ref, ssq_ref):
    # x_ref:   (TN, Hp)  batch tile (pipelined)        [matmul_dtype]
    # w1t_ref: (Hp, Hp)  pre-transposed weight         [matmul_dtype, resident]
    # b1_ref:  (1, Hp)   bias                          [f32]
    # h_ref:   (TN, Hp)  batch-tiled output            [matmul_dtype]
    # ssum/ssq:(1, Hp)   f32 accumulators (constant index map -> resident)
    @pl.when(pl.program_id(0) == 0)
    def _init():
        ssum_ref[...] = jnp.zeros_like(ssum_ref)
        ssq_ref[...] = jnp.zeros_like(ssq_ref)

    h = jnp.dot(x_ref[...], w1t_ref[...],
                preferred_element_type=jnp.float32) + b1_ref[...]
    # BN stats accumulate in f32 from the f32 accumulator output, BEFORE any
    # downcast of h for storage.
    ssum_ref[...] += jnp.sum(h, axis=0, keepdims=True)
    ssq_ref[...] += jnp.sum(h * h, axis=0, keepdims=True)
    h_ref[...] = h.astype(h_ref.dtype)


# ----------------------------------------------------------------------------
# Kernel 2: out = relu(h * scale + shift) @ w2_t, one batch tile per step.
# Grid: (num_batch_tiles,), "parallel" (megacore on v7x).
# ----------------------------------------------------------------------------
def _bn_relu_linear2_kernel(h_ref, scale_ref, shift_ref, w2t_ref, o_ref):
    # Elementwise BN/ReLU math in f32 (v5e VPU has no bf16); cast to the MXU
    # operand dtype only at the matmul boundary.
    h = h_ref[...].astype(jnp.float32)
    a = jnp.maximum(h * scale_ref[...] + shift_ref[...], 0.0)
    o_ref[...] = jnp.dot(a.astype(w2t_ref.dtype), w2t_ref[...],
                         preferred_element_type=jnp.float32)


def _round_up(v, m):
    return ((v + m - 1) // m) * m


def _default_tile(n, matmul_dtype):
    # Prefer 256-row tiles (amortizes the 256x256 MXU on v6e/v7x and per-step
    # overhead); v5e users may pass tn=128 explicitly.  bf16 tiles must be a
    # multiple of 16 (sublane packing) unless they cover the full batch.
    min_tile = 16 if jnp.dtype(matmul_dtype) == jnp.dtype(jnp.bfloat16) else 8
    for t in (256, 128, 64, 32, 16, 8):
        if t >= min_tile and t <= n and n % t == 0:
            return t
    return n


def _vmem_usable_bytes():
    try:
        cap = int(pltpu.get_tpu_info().vmem_capacity_bytes)
    except Exception:
        cap = 64 * 1024 * 1024      # conservative: v7x per-TensorCore VMEM
    return int(cap * 0.85)          # leave headroom for compiler scratch


def projection_head(x, w1, b1, gamma, beta, w2, *, tn=None,
                    matmul_dtype=jnp.bfloat16):
    """x: (N, H) float32. w1: (H, H), b1/gamma/beta: (H,), w2: (D, H).
    Returns (N, D) float32 (PyTorch weight convention, x @ W.T semantics).
    BatchNorm1d is applied in training mode (batch statistics)."""
    n, h = x.shape
    d, h2 = w2.shape
    assert h2 == h

    mm = jnp.dtype(matmul_dtype)
    mm_bytes = mm.itemsize
    if tn is None:
        tn = _default_tile(n, mm)
    assert n % tn == 0, "batch size must be divisible by the batch tile"
    if mm == jnp.dtype(jnp.bfloat16):
        assert tn % 16 == 0 or tn == n, "bf16 batch tile must be a multiple of 16"
    nt = n // tn

    # Lane-dense padded feature dims (zero padding is exact for this module).
    hp = _round_up(h, 128)
    dp = _round_up(d, 128)

    f32 = jnp.float32
    # Pre-transpose + pad once in the wrapper; cast MXU operands to bf16.
    xp = jnp.pad(x.astype(f32), ((0, 0), (0, hp - h))).astype(mm)
    w1t = jnp.pad(w1.astype(f32).T, ((0, hp - h), (0, hp - h))).astype(mm)
    w2t = jnp.pad(w2.astype(f32).T, ((0, hp - h), (0, dp - d))).astype(mm)
    b1p = jnp.pad(b1.astype(f32), (0, hp - h)).reshape(1, hp)
    gammap = jnp.pad(gamma.astype(f32), (0, hp - h)).reshape(1, hp)
    betap = jnp.pad(beta.astype(f32), (0, hp - h)).reshape(1, hp)

    usable = _vmem_usable_bytes()

    # ---- call 1: linear1 + BN stats -----------------------------------------
    need1 = (2 * tn * hp * mm_bytes        # x tiles (double-buffered)
             + 2 * hp * hp * mm_bytes      # w1_t (constant map, still 2 bufs)
             + 2 * hp * 4                  # b1
             + 2 * tn * hp * mm_bytes      # h output tiles
             + 4 * hp * 4)                 # ssum / ssq resident outputs
    limit1 = min(usable, max(2 * need1, 32 * 1024 * 1024))

    h_out, ssum, ssq = pl.pallas_call(
        _linear1_stats_kernel,
        out_shape=(jax.ShapeDtypeStruct((n, hp), mm),
                   jax.ShapeDtypeStruct((1, hp), f32),
                   jax.ShapeDtypeStruct((1, hp), f32)),
        grid_spec=pltpu.PrefetchScalarGridSpec(
            num_scalar_prefetch=0,
            grid=(nt,),
            in_specs=[
                pl.BlockSpec((tn, hp), lambda i: (i, 0)),   # x (batch-tiled)
                pl.BlockSpec((hp, hp), lambda i: (0, 0)),   # w1_t (resident)
                pl.BlockSpec((1, hp), lambda i: (0, 0)),    # b1
            ],
            out_specs=[
                pl.BlockSpec((tn, hp), lambda i: (i, 0)),   # h (batch-tiled)
                pl.BlockSpec((1, hp), lambda i: (0, 0)),    # sum accumulator
                pl.BlockSpec((1, hp), lambda i: (0, 0)),    # sum-sq accumulator
            ],
        ),
        compiler_params=pltpu.CompilerParams(
            dimension_semantics=("arbitrary",),   # batch axis carries BN stats
            vmem_limit_bytes=limit1),
        cost_estimate=pl.CostEstimate(
            flops=2 * n * hp * hp + 4 * n * hp,
            transcendentals=0,
            bytes_accessed=(2 * n * hp * mm_bytes + hp * hp * mm_bytes
                            + 3 * hp * 4)),
    )(xp, w1t, b1p)

    # Fold BN into a single per-feature scale/shift (O(Hp) work, done in jnp):
    #   scale = gamma * rsqrt(var + eps),  shift = beta - mean * scale
    inv_n = jnp.float32(1.0 / n)
    mean = ssum * inv_n
    var = jnp.maximum(ssq * inv_n - mean * mean, 0.0)
    scale = gammap * lax.rsqrt(var + BN_EPS)
    shift = betap - mean * scale

    # ---- call 2: scale/shift (BN) + ReLU + linear2 ---------------------------
    need2 = (2 * tn * hp * mm_bytes        # h tiles
             + 4 * hp * 4                  # scale / shift
             + 2 * hp * dp * mm_bytes      # w2_t
             + 2 * tn * dp * 4)            # output tiles
    limit2 = min(usable, max(2 * need2, 32 * 1024 * 1024))

    out_padded = pl.pallas_call(
        _bn_relu_linear2_kernel,
        out_shape=jax.ShapeDtypeStruct((n, dp), f32),
        grid_spec=pltpu.PrefetchScalarGridSpec(
            num_scalar_prefetch=0,
            grid=(nt,),
            in_specs=[
                pl.BlockSpec((tn, hp), lambda i: (i, 0)),   # h (batch-tiled)
                pl.BlockSpec((1, hp), lambda i: (0, 0)),    # scale
                pl.BlockSpec((1, hp), lambda i: (0, 0)),    # shift
                pl.BlockSpec((hp, dp), lambda i: (0, 0)),   # w2_t (resident)
            ],
            out_specs=pl.BlockSpec((tn, dp), lambda i: (i, 0)),
        ),
        compiler_params=pltpu.CompilerParams(
            dimension_semantics=("parallel",),   # batch tiles independent
            vmem_limit_bytes=limit2),
        cost_estimate=pl.CostEstimate(
            flops=2 * n * hp * dp + 4 * n * hp,
            transcendentals=0,
            bytes_accessed=(n * hp * mm_bytes + hp * dp * mm_bytes
                            + n * dp * 4 + 2 * hp * 4)),
    )(h_out, scale, shift, w2t)

    return out_padded[:, :d]


def projection_head_ref(x, w1, b1, gamma, beta, w2):
    h = x @ w1.T + b1
    mean = jnp.mean(h, axis=0, keepdims=True)
    var = jnp.mean((h - mean) ** 2, axis=0, keepdims=True)
    h = (h - mean) / jnp.sqrt(var + BN_EPS)
    h = h * gamma + beta
    h = jnp.maximum(h, 0.0)
    return h @ w2.T


if __name__ == "__main__":
    N, H, D = 32, 32, 16  # batch, num_last_hidden_units, d

    key = jax.random.PRNGKey(0)
    kx, kw1, kb1, kg, kbt, kw2 = jax.random.split(key, 6)

    x = jax.random.normal(kx, (N, H), dtype=jnp.float32)

    # Deterministic synthetic parameters (PyTorch-like init scales; non-trivial
    # gamma/beta so the affine BN path is exercised).
    bound = 1.0 / float(H) ** 0.5
    w1 = jax.random.uniform(kw1, (H, H), jnp.float32, -bound, bound)
    b1 = jax.random.uniform(kb1, (H,), jnp.float32, -bound, bound)
    gamma = jax.random.uniform(kg, (H,), jnp.float32, 0.5, 1.5)
    beta = jax.random.uniform(kbt, (H,), jnp.float32, -0.5, 0.5)
    w2 = jax.random.uniform(kw2, (D, H), jnp.float32, -bound, bound)

    ref = projection_head_ref(x, w1, b1, gamma, beta, w2)

    # Default path: bf16 MXU operands, f32 accumulation / BN stats.
    out_bf16 = projection_head(x, w1, b1, gamma, beta, w2, tn=16)  # grid=(2,)
    jax.block_until_ready(out_bf16)
    assert out_bf16.shape == (N, D)
    assert jnp.allclose(out_bf16, ref, atol=3e-2, rtol=3e-2), \
        "bf16 kernel mismatch vs reference"

    # f32 operand path for a tight numeric check of the kernel structure.
    out_f32 = projection_head(x, w1, b1, gamma, beta, w2, tn=16,
                              matmul_dtype=jnp.float32)
    jax.block_until_ready(out_f32)
    assert jnp.allclose(out_f32, ref, atol=1e-4, rtol=1e-4), \
        "f32 kernel mismatch vs reference"

    print("KERNEL_OK")
</pallas_src>

<mosaic_0001>
module attributes {stable_mosaic.version = 11 : i64} {
  func.func @_linear1_stats_kernel(%arg0: i32, %arg1: memref<16x128xbf16, #tpu.memory_space<vmem>>, %arg2: memref<128x128xbf16, #tpu.memory_space<vmem>>, %arg3: memref<1x128xf32, #tpu.memory_space<vmem>>, %arg4: memref<16x128xbf16, #tpu.memory_space<vmem>>, %arg5: memref<1x128xf32, #tpu.memory_space<vmem>>, %arg6: memref<1x128xf32, #tpu.memory_space<vmem>>) attributes {dimension_semantics = [#tpu.dimension_semantics<arbitrary>], iteration_bounds = array<i64: 2>, scalar_prefetch = 0 : i64, scratch_operands = 0 : i64, tpu.core_type = #tpu.core_type<tc>, window_params = [{transform_indices = @transform_0, window_bounds = array<i64: 16, 128>}, {pipeline_mode = #tpu.pipeline_mode<synchronous>, transform_indices = @transform_1, window_bounds = array<i64: 128, 128>}, {pipeline_mode = #tpu.pipeline_mode<synchronous>, transform_indices = @transform_2, window_bounds = array<i64: 1, 128>}, {transform_indices = @transform_3, window_bounds = array<i64: 16, 128>}, {pipeline_mode = #tpu.pipeline_mode<synchronous>, transform_indices = @transform_4, window_bounds = array<i64: 1, 128>}, {pipeline_mode = #tpu.pipeline_mode<synchronous>, transform_indices = @transform_5, window_bounds = array<i64: 1, 128>}]} {
    %c0_i32 = arith.constant 0 : i32
    %0 = arith.cmpi eq, %arg0, %c0_i32 : i32
    %1 = arith.extui %0 : i1 to i32
    %c0_i32_0 = arith.constant 0 : i32
    %2 = arith.cmpi ne, %1, %c0_i32_0 : i32
    scf.if %2 {
      %cst_18 = arith.constant 0.000000e+00 : f32
      %22 = vector.broadcast %cst_18 : f32 to vector<1x128xf32>
      %c0_19 = arith.constant 0 : index
      %c0_20 = arith.constant 0 : index
      %23 = vector.load %arg5[%c0_19, %c0_20] : memref<1x128xf32, #tpu.memory_space<vmem>>, vector<1x128xf32>
      tpu.vector_store %arg5[%c0_19, %c0_20], %22 {strides = array<i32>} : memref<1x128xf32, #tpu.memory_space<vmem>>, vector<1x128xf32>,
      %cst_21 = arith.constant 0.000000e+00 : f32
      %24 = vector.broadcast %cst_21 : f32 to vector<1x128xf32>
      %c0_22 = arith.constant 0 : index
      %c0_23 = arith.constant 0 : index
      %25 = vector.load %arg6[%c0_22, %c0_23] : memref<1x128xf32, #tpu.memory_space<vmem>>, vector<1x128xf32>
      tpu.vector_store %arg6[%c0_22, %c0_23], %24 {strides = array<i32>} : memref<1x128xf32, #tpu.memory_space<vmem>>, vector<1x128xf32>,
    } else {
    }
    %c0 = arith.constant 0 : index
    %c0_1 = arith.constant 0 : index
    %3 = vector.load %arg1[%c0, %c0_1] : memref<16x128xbf16, #tpu.memory_space<vmem>>, vector<16x128xbf16>
    %c0_2 = arith.constant 0 : index
    %c0_3 = arith.constant 0 : index
    %4 = vector.load %arg2[%c0_2, %c0_3] : memref<128x128xbf16, #tpu.memory_space<vmem>>, vector<128x128xbf16>
    %cst = arith.constant dense<0.000000e+00> : vector<16x128xf32>
    %5 = tpu.matmul %3, %4, %cst {dimension_numbers = #tpu.dot_dimension_numbers<[1], [0], [0], [1], [0, 0, 1, 1], [], []>} : vector<16x128xbf16>, vector<128x128xbf16>, vector<16x128xf32> -> vector<16x128xf32>
    %c0_4 = arith.constant 0 : index
    %c0_5 = arith.constant 0 : index
    %6 = vector.load %arg3[%c0_4, %c0_5] : memref<1x128xf32, #tpu.memory_space<vmem>>, vector<1x128xf32>
    %7 = vector.broadcast %6 : vector<1x128xf32> to vector<16x128xf32>
    %8 = arith.addf %5, %7 : vector<16x128xf32>
    %c0_6 = arith.constant 0 : index
    %c0_7 = arith.constant 0 : index
    %9 = vector.load %arg5[%c0_6, %c0_7] : memref<1x128xf32, #tpu.memory_space<vmem>>, vector<1x128xf32>
    %cst_8 = arith.constant dense<0.000000e+00> : vector<128xf32>
    %10 = vector.multi_reduction <add>, %8, %cst_8 [0] : vector<16x128xf32> to vector<128xf32>
    %11 = vector.shape_cast %10 : vector<128xf32> to vector<1x128xf32>
    %12 = arith.addf %9, %11 : vector<1x128xf32>
    %c0_9 = arith.constant 0 : index
    %c0_10 = arith.constant 0 : index
    %13 = vector.load %arg5[%c0_9, %c0_10] : memref<1x128xf32, #tpu.memory_space<vmem>>, vector<1x128xf32>
    tpu.vector_store %arg5[%c0_9, %c0_10], %12 {strides = array<i32>} : memref<1x128xf32, #tpu.memory_space<vmem>>, vector<1x128xf32>,
    %c0_11 = arith.constant 0 : index
    %c0_12 = arith.constant 0 : index
    %14 = vector.load %arg6[%c0_11, %c0_12] : memref<1x128xf32, #tpu.memory_space<vmem>>, vector<1x128xf32>
    %15 = arith.mulf %8, %8 : vector<16x128xf32>
    %cst_13 = arith.constant dense<0.000000e+00> : vector<128xf32>
    %16 = vector.multi_reduction <add>, %15, %cst_13 [0] : vector<16x128xf32> to vector<128xf32>
    %17 = vector.shape_cast %16 : vector<128xf32> to vector<1x128xf32>
    %18 = arith.addf %14, %17 : vector<1x128xf32>
    %c0_14 = arith.constant 0 : index
    %c0_15 = arith.constant 0 : index
    %19 = vector.load %arg6[%c0_14, %c0_15] : memref<1x128xf32, #tpu.memory_space<vmem>>, vector<1x128xf32>
    tpu.vector_store %arg6[%c0_14, %c0_15], %18 {strides = array<i32>} : memref<1x128xf32, #tpu.memory_space<vmem>>, vector<1x128xf32>,
    %20 = arith.truncf %8 : vector<16x128xf32> to vector<16x128xbf16>
    %c0_16 = arith.constant 0 : index
    %c0_17 = arith.constant 0 : index
    %21 = vector.load %arg4[%c0_16, %c0_17] : memref<16x128xbf16, #tpu.memory_space<vmem>>, vector<16x128xbf16>
    tpu.vector_store %arg4[%c0_16, %c0_17], %20 {strides = array<i32>} : memref<16x128xbf16, #tpu.memory_space<vmem>>, vector<16x128xbf16>,
    return
  }
  func.func @transform_0(%arg0: i32) -> (i32, i32) {
    %c0_i32 = arith.constant 0 : i32
    %c0_i32_0 = arith.constant 0 : i32
    return %arg0, %c0_i32 : i32, i32
  }
  func.func @transform_1(%arg0: i32) -> (i32, i32) {
    %c0_i32 = arith.constant 0 : i32
    %c0_i32_0 = arith.constant 0 : i32
    %c0_i32_1 = arith.constant 0 : i32
    return %c0_i32, %c0_i32_0 : i32, i32
  }
  func.func @transform_2(%arg0: i32) -> (i32, i32) {
    %c0_i32 = arith.constant 0 : i32
    %c0_i32_0 = arith.constant 0 : i32
    %c0_i32_1 = arith.constant 0 : i32
    return %c0_i32, %c0_i32_0 : i32, i32
  }
  func.func @transform_3(%arg0: i32) -> (i32, i32) {
    %c0_i32 = arith.constant 0 : i32
    %c0_i32_0 = arith.constant 0 : i32
    return %arg0, %c0_i32 : i32, i32
  }
  func.func @transform_4(%arg0: i32) -> (i32, i32) {
    %c0_i32 = arith.constant 0 : i32
    %c0_i32_0 = arith.constant 0 : i32
    %c0_i32_1 = arith.constant 0 : i32
    return %c0_i32, %c0_i32_0 : i32, i32
  }
  func.func @transform_5(%arg0: i32) -> (i32, i32) {
    %c0_i32 = arith.constant 0 : i32
    %c0_i32_0 = arith.constant 0 : i32
    %c0_i32_1 = arith.constant 0 : i32
    return %c0_i32, %c0_i32_0 : i32, i32
  }
}

</mosaic_0001>

<llo_original>
// kernel: tpu_custom_call.1
$region0: #{tpu_custom_call.1}
  #allocation0 [shape = 'u32[]', space=smem, size = 0x4, offset = 0x4, fixed_abs, tag = 'smem constant byte address 0x4 - core index']
  #allocation1 [shape = 'u32[144,128]{1,0:T(1,128)}', space=vmem, size = 0x12000, scoped, tag = 'internal scratch']
  %s0 = inlined_call_operand.hbm [shape: bf16[32,128], index: 0, kind: input, shape index: {}]
  %s1 = inlined_call_operand.hbm [shape: bf16[128,128], index: 1, kind: input, shape index: {}]
  %s2 = inlined_call_operand.vmem [shape: f32[1,128], index: 2, kind: input, shape index: {}]
  %s3 = inlined_call_operand.hbm [shape: bf16[32,128], index: 3, kind: output, shape index: {0}]
  %s4 = inlined_call_operand.hbm [shape: f32[1,128], index: 4, kind: output, shape index: {1}]
  %s5 = inlined_call_operand.hbm [shape: f32[1,128], index: 5, kind: output, shape index: {2}]
  %6 = xla_tuple %s3, %s4, %s5
  %s7 = sld [smem:[#allocation0]]
  $region73: #{tpu_custom_call.1} parent=0
    _
  %s9 = ssub.s32 1, %s7
  %s10 = scalar_select 0, %s9, %s7
  $region1: #{tpu_custom_call.1} parent=0
    #allocation2 [shape = 'u8[8192]{0}', space=vmem, size = 0x2000, scoped, tag = 'input window, operand 0']
    #allocation3 [shape = 's32[2]{0}', space=sflag, size = 0x8, scoped, tag = 'scoped memory for tpu_custom_call.1']
    #allocation4 [shape = 's32[2]{0}', space=sflag, size = 0x8, scoped, tag = 'scoped memory for tpu_custom_call.1']
    #allocation5 [shape = 'u8[32768]{0}', space=vmem, size = 0x8000, scoped, tag = 'input window, operand 1, single buffered']
    #allocation6 [shape = 's32[1]{0}', space=sflag, size = 0x4, scoped, tag = 'scoped memory for tpu_custom_call.1']
    #allocation7 [shape = 'u8[8192]{0}', space=vmem, size = 0x2000, scoped, tag = 'output window, operand 0']
    #allocation8 [shape = 'u8[512]{0}', space=vmem, size = 0x400, scoped, tag = 'output window, operand 1, single buffered']
    #allocation9 [shape = 's32[1]{0}', space=sflag, size = 0x4, scoped, tag = 'scoped memory for tpu_custom_call.1']
    #allocation10 [shape = 'u8[512]{0}', space=vmem, size = 0x400, scoped, tag = 'output window, operand 2, single buffered']
    %11 = vsyncpa [#allocation3], 0
    %s12 = scalar_lea.sflag [#allocation3], 1
    %13 = vsyncpa %s12, 0
    %14 = vsyncpa [#allocation6], 0
    %15 = vsyncpa [#allocation4], 0
    %s16 = scalar_lea.sflag [#allocation4], 1
    %17 = vsyncpa %s16, 0
    %18 = vsyncpa [#allocation9], 0
    loop: start=0, step=1, limit=4
    $region2: #{tpu_custom_call.1} parent=1 // loop_pre_header
      _
    $region3: #{tpu_custom_call.1} parent=1 // loop_header
      %s20 = sphi 0, %s24
      %p21 = scmp.ge.s32.totalorder %s20, 4
      %s30 = sphi 0, %s32
      %s33 = sphi 0, %s30
      %s34 = sphi 0, %s33
      %s50 = sphi 0, %s34
      %s54 = sphi 0, %s54
      %s56 = sphi 0, %s54
      %s57 = sphi 0, %s56
      %s71 = sphi 0, %s57
      %s75 = sphi 0, %s75
      %s77 = sphi 0, %s75
      %s78 = sphi 0, %s77
      %s92 = sphi 0, %s78
      %s98 = sphi 0, %s100
      %s101 = sphi 0, %s98
      %s102 = sphi 0, %s101
      %s118 = sphi 0, %s102
      %s122 = sphi 0, %s122
      %s124 = sphi 0, %s122
      %s125 = sphi 0, %s124
      %s139 = sphi 0, %s125
      %s143 = sphi 0, %s143
      %s145 = sphi 0, %s143
      %s146 = sphi 0, %s145
      %s160 = sphi 0, %s146
    $region4: #{tpu_custom_call.1} parent=1 // loop_header_branch
      %23 = sbr.rel (%p21) target = $region8
    $region5: #{tpu_custom_call.1} parent=1 // loop_body
      %s25 = ssub.s32 %s20, 1
      %s26 = ssub.s32 %s20, 2
      %s27 = sadd.s32 %s20, 1
      %s28 = ssub.s32 %s20, %s27
      %p29 = scmp.eq.s32.totalorder %s28, 0
      %s31 = sadd.s32 %s30, 1
      %s32 = scalar_select %p29, %s30, %s31
      %p35 = pneg %p29
      %p36 = scmp.eq.s32.totalorder %s20, 1
      %p37 = por %p35, %p36
      %p38 = scmp.ne.s32.totalorder %s30, %s33
      %p39 = scmp.eq.s32.totalorder %s20, 0
      %p40 = por %p38, %p39
      %p41 = scmp.ne.s32.totalorder %s30, %s33
      %p42 = scmp.eq.s32.totalorder %s25, 1
      %p43 = por %p41, %p42
      %p44 = scmp.ne.s32.totalorder %s33, %s34
      %p45 = scmp.eq.s32.totalorder %s25, 0
      %p46 = por %p44, %p45
      %p47 = scmp.ne.s32.totalorder %s33, %s34
      %p48 = scmp.eq.s32.totalorder %s26, 1
      %p49 = por %p47, %p48
      %p51 = scmp.ne.s32.totalorder %s34, %s50
      %p52 = scmp.eq.s32.totalorder %s26, 0
      %p53 = por %p51, %p52
      %s55 = sadd.s32 %s54, 1
      %p58 = scmp.eq.s32.totalorder %s20, 1
      %p59 = scmp.ne.s32.totalorder %s54, %s56
      %p60 = scmp.eq.s32.totalorder %s20, 0
      %p61 = por %p59, %p60
      %p62 = scmp.ne.s32.totalorder %s54, %s56
      %p63 = scmp.eq.s32.totalorder %s25, 1
      %p64 = por %p62, %p63
      %p65 = scmp.ne.s32.totalorder %s56, %s57
      %p66 = scmp.eq.s32.totalorder %s25, 0
      %p67 = por %p65, %p66
      %p68 = scmp.ne.s32.totalorder %s56, %s57
      %p69 = scmp.eq.s32.totalorder %s26, 1
      %p70 = por %p68, %p69
      %p72 = scmp.ne.s32.totalorder %s57, %s71
      %p73 = scmp.eq.s32.totalorder %s26, 0
      %p74 = por %p72, %p73
      %s76 = sadd.s32 %s75, 1
      %p79 = scmp.eq.s32.totalorder %s20, 1
      %p80 = scmp.ne.s32.totalorder %s75, %s77
      %p81 = scmp.eq.s32.totalorder %s20, 0
      %p82 = por %p80, %p81
      %p83 = scmp.ne.s32.totalorder %s75, %s77
      %p84 = scmp.eq.s32.totalorder %s25, 1
      %p85 = por %p83, %p84
      %p86 = scmp.ne.s32.totalorder %s77, %s78
      %p87 = scmp.eq.s32.totalorder %s25, 0
      %p88 = por %p86, %p87
      %p89 = scmp.ne.s32.totalorder %s77, %s78
      %p90 = scmp.eq.s32.totalorder %s26, 1
      %p91 = por %p89, %p90
      %p93 = scmp.ne.s32.totalorder %s78, %s92
      %p94 = scmp.eq.s32.totalorder %s26, 0
      %p95 = por %p93, %p94
      %s96 = ssub.s32 %s20, %s27
      %p97 = scmp.eq.s32.totalorder %s96, 0
      %s99 = sadd.s32 %s98, 1
      %s100 = scalar_select %p97, %s98, %s99
      %p103 = pneg %p97
      %p104 = scmp.eq.s32.totalorder %s20, 1
      %p105 = por %p103, %p104
      %p106 = scmp.ne.s32.totalorder %s98, %s101
      %p107 = scmp.eq.s32.totalorder %s20, 0
      %p108 = por %p106, %p107
      %p109 = scmp.ne.s32.totalorder %s98, %s101
      %p110 = scmp.eq.s32.totalorder %s25, 1
      %p111 = por %p109, %p110
      %p112 = scmp.ne.s32.totalorder %s101, %s102
      %p113 = scmp.eq.s32.totalorder %s25, 0
      %p114 = por %p112, %p113
      %p115 = scmp.ne.s32.totalorder %s101, %s102
      %p116 = scmp.eq.s32.totalorder %s26, 1
      %p117 = por %p115, %p116
      %p119 = scmp.ne.s32.totalorder %s102, %s118
      %p120 = scmp.eq.s32.totalorder %s26, 0
      %p121 = por %p119, %p120
      %s123 = sadd.s32 %s122, 1
      %p126 = scmp.eq.s32.totalorder %s20, 1
      %p127 = scmp.ne.s32.totalorder %s122, %s124
      %p128 = scmp.eq.s32.totalorder %s20, 0
      %p129 = por %p127, %p128
      %p130 = scmp.ne.s32.totalorder %s122, %s124
      %p131 = scmp.eq.s32.totalorder %s25, 1
      %p132 = por %p130, %p131
      %p133 = scmp.ne.s32.totalorder %s124, %s125
      %p134 = scmp.eq.s32.totalorder %s25, 0
      %p135 = por %p133, %p134
      %p136 = scmp.ne.s32.totalorder %s124, %s125
      %p137 = scmp.eq.s32.totalorder %s26, 1
      %p138 = por %p136, %p137
      %p140 = scmp.ne.s32.totalorder %s125, %s139
      %p141 = scmp.eq.s32.totalorder %s26, 0
      %p142 = por %p140, %p141
      %s144 = sadd.s32 %s143, 1
      %p147 = scmp.eq.s32.totalorder %s20, 1
      %p148 = scmp.ne.s32.totalorder %s143, %s145
      %p149 = scmp.eq.s32.totalorder %s20, 0
      %p150 = por %p148, %p149
      %p151 = scmp.ne.s32.totalorder %s143, %s145
      %p152 = scmp.eq.s32.totalorder %s25, 1
      %p153 = por %p151, %p152
      %p154 = scmp.ne.s32.totalorder %s145, %s146
      %p155 = scmp.eq.s32.totalorder %s25, 0
      %p156 = por %p154, %p155
      %p157 = scmp.ne.s32.totalorder %s145, %s146
      %p158 = scmp.eq.s32.totalorder %s26, 1
      %p159 = por %p157, %p158
      %p161 = scmp.ne.s32.totalorder %s146, %s160
      %p162 = scmp.eq.s32.totalorder %s26, 0
      %p163 = por %p161, %p162
      %p164 = scmp.le.s32.totalorder 1, %s20
      %p165 = scmp.lt.s32.totalorder %s20, 3
      %p166 = pnand %p164, %p165
      %p167 = pneg %p166
      // Predicated region
      $region9: #{tpu_custom_call.1} parent=5 // pred_check
        _
      $region10: #{tpu_custom_call.1} parent=5 // pred_check_branch
        %169 = sbr.rel (%p166) target = $region12
      $region11: #{tpu_custom_call.1} parent=5 // pred_region
        %s170 = ssub.s32 %s20, 1
        // Predicated region
        $region13: #{tpu_custom_call.1} parent=11 // pred_check
          %p171 = pneg %p67
        $region14: #{tpu_custom_call.1} parent=11 // pred_check_branch
          %173 = sbr.rel (%p171) target = $region16
        $region15: #{tpu_custom_call.1} parent=11 // pred_region
          %s175 = ssub.s32 1024, 1024
          %176 = vsyncadd [#allocation6], %s175
          %s177 = sshll.u32 [#allocation5], 4
          %s178 = int_to_ptr.vmem [resolvable:$true] %s177
          %183 = dma.hbm_to_vmem [thread:$0]  %s1, 1024, %s178, [#allocation6], 64, 64, 4
        $region16: #{tpu_custom_call.1} parent=11 // pred_fallthru
          _
        // Predicated region
        $region17: #{tpu_custom_call.1} parent=11 // pred_check
          %p184 = pneg %p88
        $region18: #{tpu_custom_call.1} parent=11 // pred_check_branch
          %186 = sbr.rel (%p184) target = $region20
        $region19: #{tpu_custom_call.1} parent=11 // pred_region
          _
        $region20: #{tpu_custom_call.1} parent=11 // pred_fallthru
          _
      $region12: #{tpu_custom_call.1} parent=5 // pred_fallthru
        _
      %p187 = scmp.lt.s32.totalorder %s20, 2
      // Predicated region
      $region21: #{tpu_custom_call.1} parent=5 // pred_check
        %p188 = pneg %p187
      $region22: #{tpu_custom_call.1} parent=5 // pred_check_branch
        %190 = sbr.rel (%p188) target = $region24
      $region23: #{tpu_custom_call.1} parent=5 // pred_region
        // Predicated region
        $region25: #{tpu_custom_call.1} parent=23 // pred_check
          %p191 = pneg %p40
        $region26: #{tpu_custom_call.1} parent=23 // pred_check_branch
          %193 = sbr.rel (%p191) target = $region28
        $region27: #{tpu_custom_call.1} parent=23 // pred_region
          %s194 = sand.u32 %s30, 1
          %s195 = scalar_lea.sflag [#allocation3], %s194
          %s196 = sand.u32 %s30, 1
          %s197 = smul.addr %s196, 8
          %s198 = scalar_lea.vmem [#allocation2], %s197
          %s199 = smul.u32 2, %s20
          %s201 = ssub.s32 128, 128
          %202 = vsyncadd %s195, %s201
          %s203 = smul.addr %s199, 64
          %s204 = scalar_lea.hbm %s0, %s203
          %s205 = sshll.u32 %s198, 4
          %s206 = int_to_ptr.vmem [resolvable:$true] %s205
          %211 = dma.hbm_to_vmem [thread:$0]  %s204, 128, %s206, %s195, 64, 64, 4
        $region28: #{tpu_custom_call.1} parent=23 // pred_fallthru
          _
      $region24: #{tpu_custom_call.1} parent=5 // pred_fallthru
        _
      %p212 = scmp.le.s32.totalorder 1, %s20
      %p213 = scmp.lt.s32.totalorder %s20, 3
      %p214 = pnand %p212, %p213
      %p215 = pneg %p214
      // Predicated region
      $region29: #{tpu_custom_call.1} parent=5 // pred_check
        _
      $region30: #{tpu_custom_call.1} parent=5 // pred_check_branch
        %217 = sbr.rel (%p214) target = $region32
      $region31: #{tpu_custom_call.1} parent=5 // pred_region
        %s218 = ssub.s32 %s20, 1
        %s219 = sand.u32 %s33, 1
        %s220 = scalar_lea.sflag [#allocation3], %s219
        %s221 = sand.u32 %s33, 1
        %s222 = smul.addr %s221, 8
        %s223 = scalar_lea.vmem [#allocation2], %s222
        // Predicated region
        $region33: #{tpu_custom_call.1} parent=31 // pred_check
          %p224 = pneg %p46
        $region34: #{tpu_custom_call.1} parent=31 // pred_check_branch
          %226 = sbr.rel (%p224) target = $region36
        $region35: #{tpu_custom_call.1} parent=31 // pred_region
          %227 = dma.done %s220, 128
        $region36: #{tpu_custom_call.1} parent=31 // pred_fallthru
          _
        // Predicated region
        $region37: #{tpu_custom_call.1} parent=31 // pred_check
          %p228 = pneg %p67
        $region38: #{tpu_custom_call.1} parent=31 // pred_check_branch
          %230 = sbr.rel (%p228) target = $region40
        $region39: #{tpu_custom_call.1} parent=31 // pred_region
          %231 = dma.done [#allocation6], 1024
        $region40: #{tpu_custom_call.1} parent=31 // pred_fallthru
          _
        %s232 = sand.u32 %s33, 1
        %s233 = scalar_lea.sflag [#allocation3], %s232
        %s234 = sand.u32 %s33, 1
        %s235 = smul.addr %s234, 8
        %s236 = scalar_lea.vmem [#allocation2], %s235
        %p237 = pneg %p46
        %p238 = pneg %p43
        %p239 = pneg %p67
        %p240 = pneg %p64
        %p241 = pneg %p88
        %p242 = pneg %p85
        %p243 = pneg %p114
        %p244 = pneg %p111
        %s245 = sand.u32 %s101, 1
        %s246 = scalar_lea.sflag [#allocation4], %s245
        %s247 = sand.u32 %s101, 1
        %s248 = smul.addr %s247, 8
        %s249 = scalar_lea.vmem [#allocation7], %s248
        %p250 = pneg %p135
        %p251 = pneg %p132
        %p252 = pneg %p156
        %p253 = pneg %p153
        %s254 = smul.u32 2, %s25
        %s255 = smul.u32 2, %s25
        %p257 = scmp.eq.s32.totalorder %s25, 0
        // Predicated region
        $region41: #{tpu_custom_call.1} parent=31 // pred_check
          %p258 = pneg %p257
        $region42: #{tpu_custom_call.1} parent=31 // pred_check_branch
          %260 = sbr.rel (%p258) target = $region44
        $region43: #{tpu_custom_call.1} parent=31 // pred_region
          %261 = vst [vmem:[#allocation8] sm:$0x1] 0.0
          %262 = vst [vmem:[#allocation10] sm:$0x1] 0.0
        $region44: #{tpu_custom_call.1} parent=31 // pred_fallthru
          _
        %v263 = vld [vmem:[%s223] sm:$0xf]
        %v264 = vld [vmem:[%s223 + $0x4] sm:$0xf]
        %v265 = vld [vmem:[#allocation5] sm:$0xf]
        %v266 = vld [vmem:[#allocation5 + $0x4] sm:$0xf]
        %v267 = vld [vmem:[#allocation5 + $0x8] sm:$0xf]
        %v268 = vld [vmem:[#allocation5 + $0xc] sm:$0xf]
        %v269 = vld [vmem:[#allocation5 + $0x10] sm:$0xf]
        %v270 = vld [vmem:[#allocation5 + $0x14] sm:$0xf]
        %v271 = vld [vmem:[#allocation5 + $0x18] sm:$0xf]
        %v272 = vld [vmem:[#allocation5 + $0x1c] sm:$0xf]
        %v273 = vld [vmem:[#allocation5 + $0x20] sm:$0xf]
        %v274 = vld [vmem:[#allocation5 + $0x24] sm:$0xf]
        %v275 = vld [vmem:[#allocation5 + $0x28] sm:$0xf]
        %v276 = vld [vmem:[#allocation5 + $0x2c] sm:$0xf]
        %v277 = vld [vmem:[#allocation5 + $0x30] sm:$0xf]
        %v278 = vld [vmem:[#allocation5 + $0x34] sm:$0xf]
        %v279 = vld [vmem:[#allocation5 + $0x38] sm:$0xf]
        %v280 = vld [vmem:[#allocation5 + $0x3c] sm:$0xf]
        %v281 = vld [vmem:[%s2] sm:$0x1]
        %v283 = vlaneseq
        %v284 = vshrl.u32 %v283, 7
        %v285 = vsub.s32 0, %v284
        %v286 = vrot.slane %v281, %v285
        %v290 = vunpack.c.l.b16 %v263
        %v291 = vunpack.c.l.b16 %v264
        %v292 = vpack.c.b16 %v291, %v290
        %v310 = vunpack.c.l.b16 %v265
        %v311 = vunpack.c.l.b16 %v266
        %v312 = vunpack.c.l.b16 %v267
        %v313 = vunpack.c.l.b16 %v268
        %v314 = vunpack.c.l.b16 %v269
        %v315 = vunpack.c.l.b16 %v270
        %v316 = vunpack.c.l.b16 %v271
        %v317 = vunpack.c.l.b16 %v272
        %v318 = vunpack.c.l.b16 %v273
        %v319 = vunpack.c.l.b16 %v274
        %v320 = vunpack.c.l.b16 %v275
        %v321 = vunpack.c.l.b16 %v276
        %v322 = vunpack.c.l.b16 %v277
        %v323 = vunpack.c.l.b16 %v278
        %v324 = vunpack.c.l.b16 %v279
        %v325 = vunpack.c.l.b16 %v280
        %v326 = vpack.c.b16 %v311, %v310
        %v327 = vpack.c.b16 %v313, %v312
        %v328 = vpack.c.b16 %v315, %v314
        %v329 = vpack.c.b16 %v317, %v316
        %v330 = vpack.c.b16 %v319, %v318
        %v331 = vpack.c.b16 %v321, %v320
        %v332 = vpack.c.b16 %v323, %v322
        %v333 = vpack.c.b16 %v325, %v324
        %342 = vmatprep.subr.bf16.mxu0 0
        %343 = vmatpush1.bf16.msra.mxu0 %v326
        %344 = vmatprep.subr.bf16.mxu0 0
        %345 = vmatpush1.bf16.msra.mxu0 %v327
        %346 = vmatprep.subr.bf16.mxu0 0
        %347 = vmatpush1.bf16.msra.mxu0 %v328
        %348 = vmatprep.subr.bf16.mxu0 0
        %349 = vmatpush1.bf16.msra.mxu0 %v329
        %350 = vmatprep.subr.bf16.mxu0 0
        %351 = vmatpush1.bf16.msra.mxu0 %v330
        %352 = vmatprep.subr.bf16.mxu0 0
        %353 = vmatpush1.bf16.msra.mxu0 %v331
        %354 = vmatprep.subr.bf16.mxu0 0
        %355 = vmatpush1.bf16.msra.mxu0 %v332
        %356 = vmatprep.subr.bf16.mxu0 0
        %357 = vmatpush1.bf16.msra.mxu0 %v333
        %358 = vmatprep.subr.bf16.mxu0 0
        %359 = vmatpush1.bf16.msra.mxu0 0
        %360 = vmatprep.subr.bf16.mxu0 0
        %361 = vmatpush1.bf16.msra.mxu0 0
        %362 = vmatprep.subr.bf16.mxu0 0
        %363 = vmatpush1.bf16.msra.mxu0 0
        %364 = vmatprep.subr.bf16.mxu0 0
        %365 = vmatpush1.bf16.msra.mxu0 0
        %366 = vmatprep.subr.bf16.mxu0 0
        %367 = vmatpush1.bf16.msra.mxu0 0
        %368 = vmatprep.subr.bf16.mxu0 0
        %369 = vmatpush1.bf16.msra.mxu0 0
        %370 = vmatprep.subr.bf16.mxu0 0
        %371 = vmatpush1.bf16.msra.mxu0 0
        %372 = vmatprep.subr.bf16.mxu0 0
        %373 = vmatpush1.bf16.msra.mxu0 0
        %374 = vmatprep.mubr.bf16.mxu0 0
        %375 = vmatmul.mubr.bf16.gmra.mrb[0].mxu0 %v292
        %v376 = vpop.f32.mrb[0].mxu0
        %v377 = vadd.f32 %v286, %v376
        %v378 = vpop.f32.mrb[0].mxu0
        %v379 = vpop.f32.mrb[0].mxu0
        %v380 = vadd.f32 %v286, %v379
        %v381 = vpop.f32.mrb[0].mxu0
        %382 = vdwg.mxu0
        %v383 = vld [vmem:[#allocation8] sm:$0x1]
        %v384 = vadd.f32 %v377, %v380
        %v385 = vrot.slane %v384, 4
        %v386 = vadd.f32 %v384, %v385
        %v387 = vrot.slane %v386, 2
        %v388 = vadd.f32 %v386, %v387
        %v389 = vrot.slane %v388, 1
        %v390 = vadd.f32 %v388, %v389
        %v391 = vadd.f32 %v383, %v390
        %392 = vst [vmem:[#allocation8] sm:$0x1] %v391
        %v393 = vld [vmem:[#allocation10] sm:$0x1]
        %v394 = vmul.f32 %v377, %v377
        %v395 = vmul.f32 %v380, %v380
        %v396 = vadd.f32 %v394, %v395
        %v397 = vrot.slane %v396, 4
        %v398 = vadd.f32 %v396, %v397
        %v399 = vrot.slane %v398, 2
        %v400 = vadd.f32 %v398, %v399
        %v401 = vrot.slane %v400, 1
        %v402 = vadd.f32 %v400, %v401
        %v403 = vadd.f32 %v393, %v402
        %404 = vst [vmem:[#allocation10] sm:$0x1] %v403
        %v405 = vpack.c.bf16 %v380, %v377
        %v407 = vunpack.c.l.b16 %v405
        %v408 = vunpack.c.h.b16 %v405
        %v409 = vpack.c.b16 %v407, %v407
        %v410 = vpack.c.b16 %v408, %v408
        %413 = vst [vmem:[%s249] sm:$0xf] %v409
        %414 = vst [vmem:[%s249 + $0x4] sm:$0xf] %v410
        %s415 = sand.u32 %s101, 1
        %s416 = scalar_lea.sflag [#allocation4], %s415
        %s417 = sand.u32 %s101, 1
        %s418 = smul.addr %s417, 8
        %s419 = scalar_lea.vmem [#allocation7], %s418
        // Predicated region
        $region45: #{tpu_custom_call.1} parent=31 // pred_check
          %p420 = pneg %p111
        $region46: #{tpu_custom_call.1} parent=31 // pred_check_branch
          %422 = sbr.rel (%p420) target = $region48
        $region47: #{tpu_custom_call.1} parent=31 // pred_region
          %s423 = smul.u32 2, %s25
          %s425 = ssub.s32 128, 128
          %426 = vsyncadd %s416, %s425
          %s427 = smul.addr %s423, 64
          %s428 = scalar_lea.hbm %s3, %s427
          %s429 = sshll.u32 %s419, 4
          %s430 = int_to_ptr.vmem [resolvable:$true] %s429
          %435 = dma.vmem_to_hbm [thread:$0]  %s430, 128, %s428, %s416, 64, 64, 4
        $region48: #{tpu_custom_call.1} parent=31 // pred_fallthru
          _
        // Predicated region
        $region49: #{tpu_custom_call.1} parent=31 // pred_check
          %p436 = pneg %p132
        $region50: #{tpu_custom_call.1} parent=31 // pred_check_branch
          %438 = sbr.rel (%p436) target = $region52
        $region51: #{tpu_custom_call.1} parent=31 // pred_region
          %s440 = ssub.s32 16, 16
          %441 = vsyncadd [#allocation9], %s440
          %s443 = sshll.u32 [#allocation8], 4
          %s444 = int_to_ptr.vmem [resolvable:$true] %s443
          %446 = dma.vmem_to_hbm [thread:$0]  %s444, 16, %s4, [#allocation9]
        $region52: #{tpu_custom_call.1} parent=31 // pred_fallthru
          _
        // Predicated region
        $region53: #{tpu_custom_call.1} parent=31 // pred_check
          %p447 = pneg %p153
        $region54: #{tpu_custom_call.1} parent=31 // pred_check_branch
          %449 = sbr.rel (%p447) target = $region56
        $region55: #{tpu_custom_call.1} parent=31 // pred_region
          %s451 = ssub.s32 16, 16
          %452 = vsyncadd [#allocation9], %s451
          %s454 = sshll.u32 [#allocation10], 4
          %s455 = int_to_ptr.vmem [resolvable:$true] %s454
          %457 = dma.vmem_to_hbm [thread:$0]  %s455, 16, %s5, [#allocation9]
        $region56: #{tpu_custom_call.1} parent=31 // pred_fallthru
          _
        // Predicated region
        $region57: #{tpu_custom_call.1} parent=31 // pred_check
          %p458 = pneg %p132
        $region58: #{tpu_custom_call.1} parent=31 // pred_check_branch
          %460 = sbr.rel (%p458) target = $region60
        $region59: #{tpu_custom_call.1} parent=31 // pred_region
          %461 = dma.done [#allocation9], 16
        $region60: #{tpu_custom_call.1} parent=31 // pred_fallthru
          _
        // Predicated region
        $region61: #{tpu_custom_call.1} parent=31 // pred_check
          %p462 = pneg %p153
        $region62: #{tpu_custom_call.1} parent=31 // pred_check_branch
          %464 = sbr.rel (%p462) target = $region64
        $region63: #{tpu_custom_call.1} parent=31 // pred_region
          %465 = dma.done [#allocation9], 16
        $region64: #{tpu_custom_call.1} parent=31 // pred_fallthru
          _
      $region32: #{tpu_custom_call.1} parent=5 // pred_fallthru
        _
      %p466 = scmp.le.s32.totalorder 2, %s20
      // Predicated region
      $region65: #{tpu_custom_call.1} parent=5 // pred_check
        %p467 = pneg %p466
      $region66: #{tpu_custom_call.1} parent=5 // pred_check_branch
        %469 = sbr.rel (%p467) target = $region68
      $region67: #{tpu_custom_call.1} parent=5 // pred_region
        %s470 = ssub.s32 %s20, 2
        // Predicated region
        $region69: #{tpu_custom_call.1} parent=67 // pred_check
          %p471 = pneg %p117
        $region70: #{tpu_custom_call.1} parent=67 // pred_check_branch
          %473 = sbr.rel (%p471) target = $region72
        $region71: #{tpu_custom_call.1} parent=67 // pred_region
          %s474 = sand.u32 %s102, 1
          %s475 = scalar_lea.sflag [#allocation4], %s474
          %s476 = sand.u32 %s102, 1
          %s477 = smul.addr %s476, 8
          %s478 = scalar_lea.vmem [#allocation7], %s477
          %479 = dma.done %s475, 128
        $region72: #{tpu_custom_call.1} parent=67 // pred_fallthru
          _
      $region68: #{tpu_custom_call.1} parent=5 // pred_fallthru
        _
    $region6: #{tpu_custom_call.1} parent=1 // loop_footer
      %s24 = sadd.s32 1, %s20
    $region7: #{tpu_custom_call.1} parent=1 // loop_footer_branch
      %19 = sbr.rel target = $region3
    $region8: #{tpu_custom_call.1} parent=1 // loop_exit
      _
    %480 = vsyncpa [#allocation3], 1
    %s481 = scalar_lea.sflag [#allocation3], 1
    %482 = vsyncpa %s481, 1
    %483 = vsyncpa [#allocation6], 1
    %484 = vsyncpa [#allocation4], 1
    %s485 = scalar_lea.sflag [#allocation4], 1
    %486 = vsyncpa %s485, 1
    %487 = vsyncpa [#allocation9], 1

</llo_original>
